<compile_context>
chip_gen: v6e
topology: v6e:2x2x1
jax: 0.10.0
libtpu: 0.0.40
codegen_flags: <defaults>
</compile_context>

<pallas_src>
import jax
import jax.numpy as jnp
from jax import lax
from jax.experimental import pallas as pl
from jax.experimental.pallas import tpu as pltpu

EPS = 1e-5          # BatchNorm2d eps
NEG_SLOPE = 0.2     # LeakyReLU slope


def _full_spec(shape):
    return pl.BlockSpec(shape, lambda i: (0,) * len(shape))


def _im2col_down_T(x_nchw):
    """Patches for Conv2d(k=4, s=2, p=1); rows = (ci, kh, kw) (PyTorch weight
    flattening order), cols = (n, oh, ow)."""
    N, C, H, W = x_nchw.shape
    Ho, Wo = H // 2, W // 2
    xp = jnp.pad(x_nchw, ((0, 0), (0, 0), (1, 1), (1, 1)))
    taps = []
    for kh in range(4):
        for kw in range(4):
            taps.append(xp[:, :, kh:kh + 2 * Ho:2, kw:kw + 2 * Wo:2])   # (N, C, Ho, Wo)
    p = jnp.stack(taps, axis=2)                    # (N, C, 16, Ho, Wo)
    p = jnp.transpose(p, (1, 2, 0, 3, 4))          # (C, 16, N, Ho, Wo)
    return p.reshape(C * 16, N * Ho * Wo)


def unet_innermost_forward(x, w_down, w_up, gamma, beta):
    """x: (N, input_nc, H, W) f32 NCHW.  Returns (N, input_nc + outer_nc, H, W)."""
    N, C, H, W = x.shape
    inner_nc = w_down.shape[0]
    outer_nc = w_up.shape[1]
    Ho, Wo = H // 2, W // 2
    HW = Ho * Wo
    NHW = N * HW

    # ---------------- host-side packing (tiny; weight reshuffle / gather only) -------
    # LeakyReLU BEFORE im2col: one pass over x, not over the duplicated patch data.
    lr = jnp.where(x >= 0, x, NEG_SLOPE * x)
    p_T = _im2col_down_T(lr).astype(jnp.bfloat16)                   # (C*16, NHW)
    wd_mat = w_down.reshape(inner_nc, C * 16).astype(jnp.bfloat16)  # (inner_nc, C*16)

    # ConvTranspose2d(k=4, s=2, p=1) parity decomposition:
    #   y[n,co,2m+ph,2q+pw] = sum_{rh in {ph-1,ph}, rw in {pw-1,pw}}
    #                           d[n,:,m+rh,q+rw] @ w_up[:,:,1+ph-2rh,1+pw-2rw]
    # Pack all 4 parities x 9 distinct (rh,rw) taps into ONE (4*outer_nc, 9*inner_nc)
    # weight; unused (parity, tap) blocks stay zero so a single MXU call covers the
    # whole transposed conv.
    wu_big = jnp.zeros((4 * outer_nc, 9 * inner_nc), jnp.float32)
    for ph in range(2):
        for pw in range(2):
            p_idx = ph * 2 + pw
            for rh in (ph - 1, ph):
                for rw in (pw - 1, pw):
                    t_idx = (rh + 1) * 3 + (rw + 1)
                    kh = 1 + ph - 2 * rh
                    kw = 1 + pw - 2 * rw
                    wu_big = wu_big.at[p_idx * outer_nc:(p_idx + 1) * outer_nc,
                                       t_idx * inner_nc:(t_idx + 1) * inner_nc
                                       ].set(w_up[:, :, kh, kw].T)
    wu_big = wu_big.astype(jnp.bfloat16)

    # Boundary masks for the nine shifted taps, pre-broadcast to all inner channels so
    # the kernel applies them with a single (9*inner_nc, NHW) multiply.
    col = jnp.arange(NHW, dtype=jnp.int32)
    m_pos = (col % HW) // Wo
    q_pos = col % Wo
    ones = jnp.ones((NHW,), jnp.bool_)
    rmask = {-1: m_pos != 0, 0: ones, 1: m_pos != Ho - 1}
    cmask = {-1: q_pos != 0, 0: ones, 1: q_pos != Wo - 1}
    mask_rows = []
    for rh in (-1, 0, 1):
        for rw in (-1, 0, 1):
            mk = (rmask[rh] & cmask[rw]).astype(jnp.float32)
            mask_rows.append(jnp.broadcast_to(mk, (inner_nc, NHW)))
    masks = jnp.concatenate(mask_rows, axis=0)                      # (9*inner_nc, NHW)

    # ---------------- fused Pallas kernel -------------------------------------------
    def kernel(p_ref, wd_ref, wu_ref, m_ref, g_ref, b_ref, o_ref):
        # down: LeakyReLU(0.2) (already applied) -> Conv2d(C, inner_nc, 4, 2, 1) as one
        # MXU matmul (bf16 operands, f32 accumulate), then the fused up-path ReLU.
        down = jnp.dot(wd_ref[...], p_ref[...],
                       preferred_element_type=jnp.float32)          # (inner_nc, NHW)
        d = jnp.maximum(down, 0.0)

        # Nine row/col-shifted copies of d via XLU lane rolls; image/row wrap-around is
        # killed by the precomputed masks in ONE multiply and ONE bf16 cast.
        rolled = []
        for rh in (-1, 0, 1):
            for rw in (-1, 0, 1):
                delta = rh * Wo + rw
                rolled.append(d if delta == 0
                              else pltpu.roll(d, shift=(-delta) % NHW, axis=1))
        taps = (jnp.concatenate(rolled, axis=0) * m_ref[...]).astype(jnp.bfloat16)

        # up: ConvTranspose2d(inner_nc, outer_nc, 4, 2, 1) for ALL four output parities
        # as ONE MXU contraction.  Row p*outer_nc+co, column n*HW+m*Wo+q holds
        # y[n, co, 2m+ph, 2q+pw] with p = ph*2+pw.
        u = jnp.dot(wu_ref[...], taps,
                    preferred_element_type=jnp.float32)             # (4*outer_nc, NHW)

        # BatchNorm2d (training-mode batch statistics, biased variance, affine folded
        # into a per-channel scale/shift).  Channel co lives in rows p*outer_nc+co.
        blk = [u[p * outer_nc:(p + 1) * outer_nc] for p in range(4)]
        inv_count = 1.0 / float(4 * NHW)
        mean_c = jnp.sum(blk[0] + blk[1] + blk[2] + blk[3],
                         axis=1, keepdims=True) * inv_count         # (outer_nc, 1)
        cen = [b_ - mean_c for b_ in blk]
        var_c = jnp.sum(cen[0] * cen[0] + cen[1] * cen[1]
                        + cen[2] * cen[2] + cen[3] * cen[3],
                        axis=1, keepdims=True) * inv_count          # (outer_nc, 1)
        scale = lax.rsqrt(var_c + EPS) * g_ref[...]                 # (outer_nc, 1)
        # Single lane-dense, 128-aligned full-block store.
        o_ref[...] = jnp.concatenate([c * scale + b_ref[...] for c in cen], axis=0)

    out = pl.pallas_call(
        kernel,
        out_shape=jax.ShapeDtypeStruct((4 * outer_nc, NHW), jnp.float32),
        grid=(1,),
        in_specs=[_full_spec((C * 16, NHW)),
                  _full_spec((inner_nc, C * 16)),
                  _full_spec((4 * outer_nc, 9 * inner_nc)),
                  _full_spec((9 * inner_nc, NHW)),
                  _full_spec((outer_nc, 1)),
                  _full_spec((outer_nc, 1))],
        out_specs=_full_spec((4 * outer_nc, NHW)),
    )(p_T, wd_mat, wu_big, masks, gamma.reshape(outer_nc, 1), beta.reshape(outer_nc, 1))

    # (ph, pw, co, n, m, q) -> NCHW, then the skip connection concat (XLA glue; see TODO).
    up = out.reshape(2, 2, outer_nc, N, Ho, Wo)
    up = jnp.transpose(up, (3, 2, 4, 0, 5, 1)).reshape(N, outer_nc, H, W)
    return jnp.concatenate([x, up], axis=1)


# ---------------- pure-JAX reference (same bf16-operand / f32-accumulate quantization) --

def reference_forward(x, w_down, w_up, gamma, beta):
    dn = ('NCHW', 'OIHW', 'NCHW')
    lr = jnp.where(x >= 0, x, NEG_SLOPE * x)
    down = lax.conv_general_dilated(lr.astype(jnp.bfloat16), w_down.astype(jnp.bfloat16),
                                    (2, 2), [(1, 1), (1, 1)], dimension_numbers=dn,
                                    preferred_element_type=jnp.float32)
    r = jnp.maximum(down, 0.0)
    w_conv = jnp.transpose(w_up, (1, 0, 2, 3))[:, :, ::-1, ::-1]
    up = lax.conv_general_dilated(r.astype(jnp.bfloat16), w_conv.astype(jnp.bfloat16),
                                  (1, 1), [(2, 2), (2, 2)], lhs_dilation=(2, 2),
                                  dimension_numbers=dn,
                                  preferred_element_type=jnp.float32)
    mean = jnp.mean(up, axis=(0, 2, 3), keepdims=True)
    var = jnp.mean((up - mean) ** 2, axis=(0, 2, 3), keepdims=True)
    bn = (up - mean) * lax.rsqrt(var + EPS) * gamma.reshape(1, -1, 1, 1) + beta.reshape(1, -1, 1, 1)
    return jnp.concatenate([x, bn], axis=1)


if __name__ == "__main__":
    key = jax.random.PRNGKey(0)
    k1, k2, k3, k4, k5 = jax.random.split(key, 5)

    N, outer_nc, inner_nc, H, W = 2, 4, 8, 16, 16
    input_nc = outer_nc  # input_nc=None in the module -> input_nc = outer_nc

    x = jax.random.normal(k1, (N, input_nc, H, W), jnp.float32)
    # Conv2d weight (out, in, kH, kW); ConvTranspose2d weight (in, out, kH, kW)
    w_down = 0.05 * jax.random.normal(k2, (inner_nc, input_nc, 4, 4), jnp.float32)
    w_up = 0.05 * jax.random.normal(k3, (inner_nc, outer_nc, 4, 4), jnp.float32)
    gamma = 1.0 + 0.1 * jax.random.normal(k4, (outer_nc,), jnp.float32)  # BN weight
    beta = 0.1 * jax.random.normal(k5, (outer_nc,), jnp.float32)         # BN bias

    out = jax.jit(unet_innermost_forward)(x, w_down, w_up, gamma, beta)
    out = jax.block_until_ready(out)

    ref = reference_forward(x, w_down, w_up, gamma, beta)
    assert out.shape == (N, input_nc + outer_nc, H, W), out.shape
    # bf16 matmul operands (f32 accumulation) on both sides -> differences are only
    # accumulation-order noise; 1e-2 leaves margin for bf16 rounding-boundary flips.
    err = float(jnp.max(jnp.abs(out - ref)))
    assert jnp.allclose(out, ref, atol=1e-2, rtol=1e-2), err
    print("KERNEL_OK")
</pallas_src>

<mosaic_0001>
module attributes {stable_mosaic.version = 11 : i64} {
  func.func @kernel(%arg0: i32, %arg1: memref<64x128xbf16, #tpu.memory_space<vmem>>, %arg2: memref<8x64xbf16, #tpu.memory_space<vmem>>, %arg3: memref<16x72xbf16, #tpu.memory_space<vmem>>, %arg4: memref<72x128xf32, #tpu.memory_space<vmem>>, %arg5: memref<4x1xf32, #tpu.memory_space<vmem>>, %arg6: memref<4x1xf32, #tpu.memory_space<vmem>>, %arg7: memref<16x128xf32, #tpu.memory_space<vmem>>) attributes {dimension_semantics = [#tpu.dimension_semantics<arbitrary>], iteration_bounds = array<i64: 1>, scalar_prefetch = 0 : i64, scratch_operands = 0 : i64, tpu.core_type = #tpu.core_type<tc>, window_params = [{pipeline_mode = #tpu.pipeline_mode<synchronous>, transform_indices = @transform_0, window_bounds = array<i64: 64, 128>}, {pipeline_mode = #tpu.pipeline_mode<synchronous>, transform_indices = @transform_1, window_bounds = array<i64: 8, 64>}, {pipeline_mode = #tpu.pipeline_mode<synchronous>, transform_indices = @transform_2, window_bounds = array<i64: 16, 72>}, {pipeline_mode = #tpu.pipeline_mode<synchronous>, transform_indices = @transform_3, window_bounds = array<i64: 72, 128>}, {pipeline_mode = #tpu.pipeline_mode<synchronous>, transform_indices = @transform_4, window_bounds = array<i64: 4, 1>}, {pipeline_mode = #tpu.pipeline_mode<synchronous>, transform_indices = @transform_5, window_bounds = array<i64: 4, 1>}, {pipeline_mode = #tpu.pipeline_mode<synchronous>, transform_indices = @transform_6, window_bounds = array<i64: 16, 128>}]} {
    %c0 = arith.constant 0 : index
    %c0_0 = arith.constant 0 : index
    %0 = vector.load %arg2[%c0, %c0_0] : memref<8x64xbf16, #tpu.memory_space<vmem>>, vector<8x64xbf16>
    %c0_1 = arith.constant 0 : index
    %c0_2 = arith.constant 0 : index
    %1 = vector.load %arg1[%c0_1, %c0_2] : memref<64x128xbf16, #tpu.memory_space<vmem>>, vector<64x128xbf16>
    %cst = arith.constant dense<0.000000e+00> : vector<8x128xf32>
    %2 = tpu.matmul %0, %1, %cst {dimension_numbers = #tpu.dot_dimension_numbers<[1], [0], [0], [1], [0, 0, 1, 1], [], []>} : vector<8x64xbf16>, vector<64x128xbf16>, vector<8x128xf32> -> vector<8x128xf32>
    %cst_3 = arith.constant 0.000000e+00 : f32
    %3 = vector.broadcast %cst_3 : f32 to vector<8x128xf32>
    %4 = arith.maximumf %2, %3 : vector<8x128xf32>
    %c9_i32 = arith.constant 9 : i32
    %5 = tpu.dynamic_rotate %4 by %c9_i32 dim 1 : vector<8x128xf32>, i32 -> vector<8x128xf32>
    %c8_i32 = arith.constant 8 : i32
    %6 = tpu.dynamic_rotate %4 by %c8_i32 dim 1 : vector<8x128xf32>, i32 -> vector<8x128xf32>
    %c7_i32 = arith.constant 7 : i32
    %7 = tpu.dynamic_rotate %4 by %c7_i32 dim 1 : vector<8x128xf32>, i32 -> vector<8x128xf32>
    %c1_i32 = arith.constant 1 : i32
    %8 = tpu.dynamic_rotate %4 by %c1_i32 dim 1 : vector<8x128xf32>, i32 -> vector<8x128xf32>
    %c127_i32 = arith.constant 127 : i32
    %9 = tpu.dynamic_rotate %4 by %c127_i32 dim 1 : vector<8x128xf32>, i32 -> vector<8x128xf32>
    %c121_i32 = arith.constant 121 : i32
    %10 = tpu.dynamic_rotate %4 by %c121_i32 dim 1 : vector<8x128xf32>, i32 -> vector<8x128xf32>
    %c120_i32 = arith.constant 120 : i32
    %11 = tpu.dynamic_rotate %4 by %c120_i32 dim 1 : vector<8x128xf32>, i32 -> vector<8x128xf32>
    %c119_i32 = arith.constant 119 : i32
    %12 = tpu.dynamic_rotate %4 by %c119_i32 dim 1 : vector<8x128xf32>, i32 -> vector<8x128xf32>
    %13 = tpu.concatenate %5, %6, %7, %8, %4, %9, %10, %11, %12 in 0 : vector<8x128xf32>, vector<8x128xf32>, vector<8x128xf32>, vector<8x128xf32>, vector<8x128xf32>, vector<8x128xf32>, vector<8x128xf32>, vector<8x128xf32>, vector<8x128xf32> -> vector<72x128xf32>
    %c0_4 = arith.constant 0 : index
    %c0_5 = arith.constant 0 : index
    %14 = vector.load %arg4[%c0_4, %c0_5] : memref<72x128xf32, #tpu.memory_space<vmem>>, vector<72x128xf32>
    %15 = arith.mulf %13, %14 : vector<72x128xf32>
    %16 = arith.truncf %15 : vector<72x128xf32> to vector<72x128xbf16>
    %c0_6 = arith.constant 0 : index
    %c0_7 = arith.constant 0 : index
    %17 = vector.load %arg3[%c0_6, %c0_7] : memref<16x72xbf16, #tpu.memory_space<vmem>>, vector<16x72xbf16>
    %cst_8 = arith.constant dense<0.000000e+00> : vector<16x128xf32>
    %18 = tpu.matmul %17, %16, %cst_8 {dimension_numbers = #tpu.dot_dimension_numbers<[1], [0], [0], [1], [0, 0, 1, 1], [], []>} : vector<16x72xbf16>, vector<72x128xbf16>, vector<16x128xf32> -> vector<16x128xf32>
    %19 = vector.extract_strided_slice %18 {offsets = [0, 0], sizes = [4, 128], strides = [1, 1]} : vector<16x128xf32> to vector<4x128xf32>
    %20 = vector.extract_strided_slice %18 {offsets = [4, 0], sizes = [4, 128], strides = [1, 1]} : vector<16x128xf32> to vector<4x128xf32>
    %21 = vector.extract_strided_slice %18 {offsets = [8, 0], sizes = [4, 128], strides = [1, 1]} : vector<16x128xf32> to vector<4x128xf32>
    %22 = vector.extract_strided_slice %18 {offsets = [12, 0], sizes = [4, 128], strides = [1, 1]} : vector<16x128xf32> to vector<4x128xf32>
    %23 = arith.addf %19, %20 : vector<4x128xf32>
    %24 = arith.addf %23, %21 : vector<4x128xf32>
    %25 = arith.addf %24, %22 : vector<4x128xf32>
    %cst_9 = arith.constant dense<0.000000e+00> : vector<4xf32>
    %26 = vector.multi_reduction <add>, %25, %cst_9 [1] : vector<4x128xf32> to vector<4xf32>
    %27 = vector.shape_cast %26 : vector<4xf32> to vector<4x1xf32>
    %cst_10 = arith.constant 0.001953125 : f32
    %28 = vector.broadcast %cst_10 : f32 to vector<4x1xf32>
    %29 = arith.mulf %27, %28 : vector<4x1xf32>
    %30 = vector.broadcast %29 : vector<4x1xf32> to vector<4x128xf32>
    %31 = arith.subf %19, %30 : vector<4x128xf32>
    %32 = vector.broadcast %29 : vector<4x1xf32> to vector<4x128xf32>
    %33 = arith.subf %20, %32 : vector<4x128xf32>
    %34 = vector.broadcast %29 : vector<4x1xf32> to vector<4x128xf32>
    %35 = arith.subf %21, %34 : vector<4x128xf32>
    %36 = vector.broadcast %29 : vector<4x1xf32> to vector<4x128xf32>
    %37 = arith.subf %22, %36 : vector<4x128xf32>
    %38 = arith.mulf %31, %31 : vector<4x128xf32>
    %39 = arith.mulf %33, %33 : vector<4x128xf32>
    %40 = arith.addf %38, %39 : vector<4x128xf32>
    %41 = arith.mulf %35, %35 : vector<4x128xf32>
    %42 = arith.addf %40, %41 : vector<4x128xf32>
    %43 = arith.mulf %37, %37 : vector<4x128xf32>
    %44 = arith.addf %42, %43 : vector<4x128xf32>
    %cst_11 = arith.constant dense<0.000000e+00> : vector<4xf32>
    %45 = vector.multi_reduction <add>, %44, %cst_11 [1] : vector<4x128xf32> to vector<4xf32>
    %46 = vector.shape_cast %45 : vector<4xf32> to vector<4x1xf32>
    %cst_12 = arith.constant 0.001953125 : f32
    %47 = vector.broadcast %cst_12 : f32 to vector<4x1xf32>
    %48 = arith.mulf %46, %47 : vector<4x1xf32>
    %cst_13 = arith.constant 9.99999974E-6 : f32
    %49 = vector.broadcast %cst_13 : f32 to vector<4x1xf32>
    %50 = arith.addf %48, %49 : vector<4x1xf32>
    %51 = math.rsqrt %50 : vector<4x1xf32>
    %c0_14 = arith.constant 0 : index
    %c0_15 = arith.constant 0 : index
    %52 = vector.load %arg5[%c0_14, %c0_15] : memref<4x1xf32, #tpu.memory_space<vmem>>, vector<4x1xf32>
    %53 = arith.mulf %51, %52 : vector<4x1xf32>
    %54 = vector.broadcast %53 : vector<4x1xf32> to vector<4x128xf32>
    %55 = arith.mulf %31, %54 : vector<4x128xf32>
    %c0_16 = arith.constant 0 : index
    %c0_17 = arith.constant 0 : index
    %56 = vector.load %arg6[%c0_16, %c0_17] : memref<4x1xf32, #tpu.memory_space<vmem>>, vector<4x1xf32>
    %57 = vector.broadcast %56 : vector<4x1xf32> to vector<4x128xf32>
    %58 = arith.addf %55, %57 : vector<4x128xf32>
    %59 = vector.broadcast %53 : vector<4x1xf32> to vector<4x128xf32>
    %60 = arith.mulf %33, %59 : vector<4x128xf32>
    %c0_18 = arith.constant 0 : index
    %c0_19 = arith.constant 0 : index
    %61 = vector.load %arg6[%c0_18, %c0_19] : memref<4x1xf32, #tpu.memory_space<vmem>>, vector<4x1xf32>
    %62 = vector.broadcast %61 : vector<4x1xf32> to vector<4x128xf32>
    %63 = arith.addf %60, %62 : vector<4x128xf32>
    %64 = vector.broadcast %53 : vector<4x1xf32> to vector<4x128xf32>
    %65 = arith.mulf %35, %64 : vector<4x128xf32>
    %c0_20 = arith.constant 0 : index
    %c0_21 = arith.constant 0 : index
    %66 = vector.load %arg6[%c0_20, %c0_21] : memref<4x1xf32, #tpu.memory_space<vmem>>, vector<4x1xf32>
    %67 = vector.broadcast %66 : vector<4x1xf32> to vector<4x128xf32>
    %68 = arith.addf %65, %67 : vector<4x128xf32>
    %69 = vector.broadcast %53 : vector<4x1xf32> to vector<4x128xf32>
    %70 = arith.mulf %37, %69 : vector<4x128xf32>
    %c0_22 = arith.constant 0 : index
    %c0_23 = arith.constant 0 : index
    %71 = vector.load %arg6[%c0_22, %c0_23] : memref<4x1xf32, #tpu.memory_space<vmem>>, vector<4x1xf32>
    %72 = vector.broadcast %71 : vector<4x1xf32> to vector<4x128xf32>
    %73 = arith.addf %70, %72 : vector<4x128xf32>
    %74 = tpu.concatenate %58, %63, %68, %73 in 0 : vector<4x128xf32>, vector<4x128xf32>, vector<4x128xf32>, vector<4x128xf32> -> vector<16x128xf32>
    %c0_24 = arith.constant 0 : index
    %c0_25 = arith.constant 0 : index
    %75 = vector.load %arg7[%c0_24, %c0_25] : memref<16x128xf32, #tpu.memory_space<vmem>>, vector<16x128xf32>
    tpu.vector_store %arg7[%c0_24, %c0_25], %74 {strides = array<i32>} : memref<16x128xf32, #tpu.memory_space<vmem>>, vector<16x128xf32>,
    return
  }
  func.func @transform_0(%arg0: i32) -> (i32, i32) {
    %c0_i32 = arith.constant 0 : i32
    %c0_i32_0 = arith.constant 0 : i32
    %c0_i32_1 = arith.constant 0 : i32
    return %c0_i32, %c0_i32_0 : i32, i32
  }
  func.func @transform_1(%arg0: i32) -> (i32, i32) {
    %c0_i32 = arith.constant 0 : i32
    %c0_i32_0 = arith.constant 0 : i32
    %c0_i32_1 = arith.constant 0 : i32
    return %c0_i32, %c0_i32_0 : i32, i32
  }
  func.func @transform_2(%arg0: i32) -> (i32, i32) {
    %c0_i32 = arith.constant 0 : i32
    %c0_i32_0 = arith.constant 0 : i32
    %c0_i32_1 = arith.constant 0 : i32
    return %c0_i32, %c0_i32_0 : i32, i32
  }
  func.func @transform_3(%arg0: i32) -> (i32, i32) {
    %c0_i32 = arith.constant 0 : i32
    %c0_i32_0 = arith.constant 0 : i32
    %c0_i32_1 = arith.constant 0 : i32
    return %c0_i32, %c0_i32_0 : i32, i32
  }
  func.func @transform_4(%arg0: i32) -> (i32, i32) {
    %c0_i32 = arith.constant 0 : i32
    %c0_i32_0 = arith.constant 0 : i32
    %c0_i32_1 = arith.constant 0 : i32
    return %c0_i32, %c0_i32_0 : i32, i32
  }
  func.func @transform_5(%arg0: i32) -> (i32, i32) {
    %c0_i32 = arith.constant 0 : i32
    %c0_i32_0 = arith.constant 0 : i32
    %c0_i32_1 = arith.constant 0 : i32
    return %c0_i32, %c0_i32_0 : i32, i32
  }
  func.func @transform_6(%arg0: i32) -> (i32, i32) {
    %c0_i32 = arith.constant 0 : i32
    %c0_i32_0 = arith.constant 0 : i32
    %c0_i32_1 = arith.constant 0 : i32
    return %c0_i32, %c0_i32_0 : i32, i32
  }
}

</mosaic_0001>

<llo_original>
// kernel: unet_innermost_forward.1
$region0: #{unet_innermost_forward.1}
  #allocation0 [shape = 'u32[]', space=smem, size = 0x4, offset = 0x4, fixed_abs, tag = 'smem constant byte address 0x4 - core index']
  #allocation1 [shape = 'u32[144,128]{1,0:T(1,128)}', space=vmem, size = 0x12000, scoped, tag = 'internal scratch']
  %s0 = inlined_call_operand.vmem [shape: bf16[64,128], index: 0, kind: input, shape index: {}]
  %s1 = inlined_call_operand.vmem [shape: bf16[8,64], index: 1, kind: input, shape index: {}]
  %s2 = inlined_call_operand.vmem [shape: bf16[16,72], index: 2, kind: input, shape index: {}]
  %s3 = inlined_call_operand.vmem [shape: f32[72,128], index: 3, kind: input, shape index: {}]
  %s4 = inlined_call_operand.vmem [shape: f32[4,1], index: 4, kind: input, shape index: {}]
  %s5 = inlined_call_operand.vmem [shape: f32[4,1], index: 5, kind: input, shape index: {}]
  %s6 = inlined_call_operand.vmem [shape: f32[16,128], index: 6, kind: output, shape index: {}]
  %s7 = sld [smem:[#allocation0]]
  $region34: #{unet_innermost_forward.1} parent=0
    _
  %s9 = ssub.s32 1, %s7
  %s10 = scalar_select 0, %s9, %s7
  // Predicated region
  $region2: #{unet_innermost_forward.1} parent=0 // pred_check
    _
  $region3: #{unet_innermost_forward.1} parent=0 // pred_check_branch
    %12 = sbr.rel (0) target = $region5
  $region4: #{unet_innermost_forward.1} parent=0 // pred_region
    _
  $region5: #{unet_innermost_forward.1} parent=0 // pred_fallthru
    _
  // Predicated region
  $region6: #{unet_innermost_forward.1} parent=0 // pred_check
    _
  $region7: #{unet_innermost_forward.1} parent=0 // pred_check_branch
    %14 = sbr.rel (0) target = $region9
  $region8: #{unet_innermost_forward.1} parent=0 // pred_region
    _
  $region9: #{unet_innermost_forward.1} parent=0 // pred_fallthru
    _
  // Predicated region
  $region10: #{unet_innermost_forward.1} parent=0 // pred_check
    _
  $region11: #{unet_innermost_forward.1} parent=0 // pred_check_branch
    %16 = sbr.rel (0) target = $region13
  $region12: #{unet_innermost_forward.1} parent=0 // pred_region
    _
  $region13: #{unet_innermost_forward.1} parent=0 // pred_fallthru
    _
  // Predicated region
  $region14: #{unet_innermost_forward.1} parent=0 // pred_check
    _
  $region15: #{unet_innermost_forward.1} parent=0 // pred_check_branch
    %18 = sbr.rel (0) target = $region17
  $region16: #{unet_innermost_forward.1} parent=0 // pred_region
    _
  $region17: #{unet_innermost_forward.1} parent=0 // pred_fallthru
    _
  // Predicated region
  $region18: #{unet_innermost_forward.1} parent=0 // pred_check
    _
  $region19: #{unet_innermost_forward.1} parent=0 // pred_check_branch
    %20 = sbr.rel (0) target = $region21
  $region20: #{unet_innermost_forward.1} parent=0 // pred_region
    _
  $region21: #{unet_innermost_forward.1} parent=0 // pred_fallthru
    _
  // Predicated region
  $region22: #{unet_innermost_forward.1} parent=0 // pred_check
    _
  $region23: #{unet_innermost_forward.1} parent=0 // pred_check_branch
    %22 = sbr.rel (0) target = $region25
  $region24: #{unet_innermost_forward.1} parent=0 // pred_region
    _
  $region25: #{unet_innermost_forward.1} parent=0 // pred_fallthru
    _
  %v24 = vld [vmem:[%s1] sm:$0xf]
  %v25 = vld [vmem:[%s0] sm:$0xf]
  %v26 = vld [vmem:[%s0 + $0x4] sm:$0xf]
  %v27 = vld [vmem:[%s0 + $0x8] sm:$0xf]
  %v28 = vld [vmem:[%s0 + $0xc] sm:$0xf]
  %v29 = vld [vmem:[%s0 + $0x10] sm:$0xf]
  %v30 = vld [vmem:[%s0 + $0x14] sm:$0xf]
  %v31 = vld [vmem:[%s0 + $0x18] sm:$0xf]
  %v32 = vld [vmem:[%s0 + $0x1c] sm:$0xf]
  %v41 = vunpack.c.l.b16 %v25
  %v42 = vunpack.c.l.b16 %v26
  %v43 = vunpack.c.l.b16 %v27
  %v44 = vunpack.c.l.b16 %v28
  %v45 = vunpack.c.l.b16 %v29
  %v46 = vunpack.c.l.b16 %v30
  %v47 = vunpack.c.l.b16 %v31
  %v48 = vunpack.c.l.b16 %v32
  %v49 = vpack.c.b16 %v42, %v41
  %v50 = vpack.c.b16 %v44, %v43
  %v51 = vpack.c.b16 %v46, %v45
  %v52 = vpack.c.b16 %v48, %v47
  %vm57 = vcmask 523264
  %v59 = vsel %vm57, %v24, 0
  %61 = vmatprep.subr.bf16.mxu0 0
  %62 = vmatpush1.bf16.msra.mxu0 0
  %63 = vmatprep.subr.bf16.mxu0 0
  %64 = vmatpush1.bf16.msra.mxu0 0
  %65 = vmatprep.subr.bf16.mxu0 0
  %66 = vmatpush1.bf16.msra.mxu0 0
  %67 = vmatprep.subr.bf16.mxu0 0
  %68 = vmatpush1.bf16.msra.mxu0 0
  %69 = vmatprep.subr.bf16.mxu0 0
  %70 = vmatpush1.bf16.msra.mxu0 %v52
  %71 = vmatprep.subr.bf16.mxu0 0
  %72 = vmatpush1.bf16.msra.mxu0 %v51
  %73 = vmatprep.subr.bf16.mxu0 0
  %74 = vmatpush1.bf16.msra.mxu0 %v50
  %75 = vmatprep.subr.bf16.mxu0 0
  %76 = vmatpush1.bf16.msra.mxu0 %v49
  %77 = vmatprep.subr.bf16.mxu0 0
  %78 = vmatpush2.bf16.msra.mxu0 0
  %79 = vmatprep.subr.bf16.mxu0 0
  %80 = vmatpush2.bf16.msra.mxu0 0
  %81 = vmatprep.subr.bf16.mxu0 0
  %82 = vmatpush2.bf16.msra.mxu0 0
  %83 = vmatprep.subr.bf16.mxu0 0
  %84 = vmatpush2.bf16.msra.mxu0 0
  %85 = vmatprep.subr.bf16.mxu0 0
  %86 = vmatpush2.bf16.msra.mxu0 0
  %87 = vmatprep.subr.bf16.mxu0 0
  %88 = vmatpush2.bf16.msra.mxu0 0
  %89 = vmatprep.subr.bf16.mxu0 0
  %90 = vmatpush2.bf16.msra.mxu0 0
  %91 = vmatprep.subr.bf16.mxu0 0
  %92 = vmatpush2.bf16.msra.mxu0 0
  %93 = vmatprep.mubr.bf16.mxu0 0
  %94 = vmatmul.mubr.bf16.gmra.mxu0 %v59
  %v95 = vpop.f32.mrf.mxu0
  %v96 = vadd.f32 0.0, %v95
  %v97 = vpop.f32.mrf.mxu0
  %v98 = vpop.f32.mrf.mxu0
  %v99 = vpop.f32.mrf.mxu0
  %100 = vdwg.mxu0
  %v101 = vmax.f32 %v96, 0.0
  %102 = vrot.lane.b32.xlu0 %v101, 9
  %v103 = vpop.permute.xlu0 %102
  %104 = vrot.lane.b32.xlu0 %v101, 8
  %v105 = vpop.permute.xlu0 %104
  %106 = vrot.lane.b32.xlu0 %v101, 7
  %v107 = vpop.permute.xlu0 %106
  %108 = vrot.lane.b32.xlu0 %v101, 1
  %v109 = vpop.permute.xlu0 %108
  %110 = vrot.lane.b32.xlu0 %v101, 127
  %v111 = vpop.permute.xlu0 %110
  %112 = vrot.lane.b32.xlu0 %v101, 121
  %v113 = vpop.permute.xlu0 %112
  %114 = vrot.lane.b32.xlu0 %v101, 120
  %v115 = vpop.permute.xlu0 %114
  %116 = vrot.lane.b32.xlu0 %v101, 119
  %v117 = vpop.permute.xlu0 %116
  %v118 = vld [vmem:[%s3] sm:$0xff]
  %v119 = vld [vmem:[%s3 + $0x8] sm:$0xff]
  %v120 = vld [vmem:[%s3 + $0x10] sm:$0xff]
  %v121 = vld [vmem:[%s3 + $0x18] sm:$0xff]
  %v122 = vld [vmem:[%s3 + $0x20] sm:$0xff]
  %v123 = vld [vmem:[%s3 + $0x28] sm:$0xff]
  %v124 = vld [vmem:[%s3 + $0x30] sm:$0xff]
  %v125 = vld [vmem:[%s3 + $0x38] sm:$0xff]
  %v126 = vld [vmem:[%s3 + $0x40] sm:$0xff]
  %v127 = vmul.f32 %v103, %v118
  %v128 = vmul.f32 %v105, %v119
  %v129 = vmul.f32 %v107, %v120
  %v130 = vmul.f32 %v109, %v121
  %v131 = vmul.f32 %v101, %v122
  %v132 = vmul.f32 %v111, %v123
  %v133 = vmul.f32 %v113, %v124
  %v134 = vmul.f32 %v115, %v125
  %v135 = vmul.f32 %v117, %v126
  %v136 = vpack.c.bf16 %v128, %v127
  %v137 = vpack.c.bf16 %v130, %v129
  %v138 = vpack.c.bf16 %v132, %v131
  %v139 = vpack.c.bf16 %v134, %v133
  %v140 = vpack.c.bf16 %v135, %v135
  %v141 = vld [vmem:[%s2] sm:$0xf]
  %v142 = vld [vmem:[%s2 + $0x4] sm:$0xf]
  %v145 = vunpack.c.l.b16 %v141
  %v146 = vunpack.c.l.b16 %v142
  %v147 = vpack.c.b16 %v146, %v145
  %vm148 = vcmask 588800
  %v150 = vsel %vm148, %v147, 0
  %vm152 = vcmask 1043456
  %v154 = vsel %vm152, %v140, 0
  %156 = vmatprep.subr.bf16.mxu0 0
  %157 = vmatpush1.bf16.msra.mxu0 0
  %158 = vmatprep.subr.bf16.mxu0 0
  %159 = vmatpush1.bf16.msra.mxu0 0
  %160 = vmatprep.subr.bf16.mxu0 0
  %161 = vmatpush1.bf16.msra.mxu0 0
  %162 = vmatprep.subr.bf16.mxu0 0
  %163 = vmatpush1.bf16.msra.mxu0 %v154
  %164 = vmatprep.subr.bf16.mxu0 0
  %165 = vmatpush1.bf16.msra.mxu0 %v139
  %166 = vmatprep.subr.bf16.mxu0 0
  %167 = vmatpush1.bf16.msra.mxu0 %v138
  %168 = vmatprep.subr.bf16.mxu0 0
  %169 = vmatpush1.bf16.msra.mxu0 %v137
  %170 = vmatprep.subr.bf16.mxu0 0
  %171 = vmatpush1.bf16.msra.mxu0 %v136
  %172 = vmatprep.subr.bf16.mxu0 0
  %173 = vmatpush2.bf16.msra.mxu0 0
  %174 = vmatprep.subr.bf16.mxu0 0
  %175 = vmatpush2.bf16.msra.mxu0 0
  %176 = vmatprep.subr.bf16.mxu0 0
  %177 = vmatpush2.bf16.msra.mxu0 0
  %178 = vmatprep.subr.bf16.mxu0 0
  %179 = vmatpush2.bf16.msra.mxu0 0
  %180 = vmatprep.subr.bf16.mxu0 0
  %181 = vmatpush2.bf16.msra.mxu0 0
  %182 = vmatprep.subr.bf16.mxu0 0
  %183 = vmatpush2.bf16.msra.mxu0 0
  %184 = vmatprep.subr.bf16.mxu0 0
  %185 = vmatpush2.bf16.msra.mxu0 0
  %186 = vmatprep.subr.bf16.mxu0 0
  %187 = vmatpush2.bf16.msra.mxu0 0
  %188 = vmatprep.mubr.bf16.mxu0 0
  %189 = vmatmul.mubr.bf16.gmra.mxu0 %v150
  %v190 = vpop.f32.mrf.mxu0
  %v191 = vadd.f32 0.0, %v190
  %v192 = vpop.f32.mrf.mxu0
  %v193 = vpop.f32.mrf.mxu0
  %v194 = vadd.f32 0.0, %v193
  %v195 = vpop.f32.mrf.mxu0
  %196 = vdwg.mxu0
  %v198 = vrot.slane %v191, 4
  %v200 = vadd.f32 %v191, %v198
  %v201 = vadd.f32 %v200, %v194
  %v203 = vrot.slane %v194, 4
  %v205 = vadd.f32 %v201, %v203
  %v206 = vsel %vm152, %v205, 0.0
  %207 = vadd.xlane.f32.xlu0 %v206
  %v208 = vpop.xlane.xlu0 %207
  %v209 = vmul.f32 %v208, 0.001953125
  %v210 = vsub.f32 %v191, %v209
  %v212 = vrot.slane %v209, 4
  %v214 = vsub.f32 %v191, %v212
  %v215 = vsub.f32 %v194, %v209
  %v216 = vsub.f32 %v194, %v212
  %v217 = vmul.f32 %v210, %v210
  %v218 = vmul.f32 %v214, %v214
  %v220 = vrot.slane %v218, 4
  %v222 = vadd.f32 %v217, %v220
  %v223 = vmul.f32 %v215, %v215
  %v224 = vadd.f32 %v222, %v223
  %v225 = vmul.f32 %v216, %v216
  %v227 = vrot.slane %v225, 4
  %v229 = vadd.f32 %v224, %v227
  %v230 = vsel %vm152, %v229, 0.0
  %231 = vadd.xlane.f32.xlu0 %v230
  %v232 = vpop.xlane.xlu0 %231
  %v233 = vmul.f32 %v232, 0.001953125
  %v234 = vadd.f32 %v233, 1e-05
  %v235 = vrsqrt.pop %v234
  %v236 = vld [vmem:[%s4] sm:$0xf]
  %v237 = vmul.f32 %v235, %v236
  %239 = vset.pattern.permute.xlu0 0
  %240 = vperm.xlu0 %239, %v237
  %v241 = vpop.permute.xlu0 %240
  %v243 = vmul.f32 %v210, %v241
  %v244 = vld [vmem:[%s5] sm:$0xf]
  %246 = vset.pattern.permute.xlu0 0
  %247 = vperm.xlu0 %246, %v244
  %v248 = vpop.permute.xlu0 %247
  %v250 = vadd.f32 %v243, %v248
  %v251 = vrot.slane %v241, 4
  %v253 = vmul.f32 %v214, %v251
  %v254 = vrot.slane %v248, 4
  %v256 = vadd.f32 %v253, %v254
  %v257 = vmul.f32 %v215, %v241
  %v258 = vadd.f32 %v257, %v248
  %v259 = vmul.f32 %v216, %v251
  %v260 = vadd.f32 %v259, %v254
  %v261 = vsel %vm152, %v250, %v256
  %v262 = vsel %vm152, %v258, %v260
  %263 = vst [vmem:[%s6] sm:$0xff] %v261
  %264 = vst [vmem:[%s6 + $0x8] sm:$0xff] %v262
  // Predicated region
  $region26: #{unet_innermost_forward.1} parent=0 // pred_check
    _
  $region27: #{unet_innermost_forward.1} parent=0 // pred_check_branch
    %266 = sbr.rel (0) target = $region29
  $region28: #{unet_innermost_forward.1} parent=0 // pred_region
    _
  $region29: #{unet_innermost_forward.1} parent=0 // pred_fallthru
    _
  // Predicated region
  $region30: #{unet_innermost_forward.1} parent=0 // pred_check
    _
  $region31: #{unet_innermost_forward.1} parent=0 // pred_check_branch
    %268 = sbr.rel (0) target = $region33
  $region32: #{unet_innermost_forward.1} parent=0 // pred_region
    _
  $region33: #{unet_innermost_forward.1} parent=0 // pred_fallthru
    _

</llo_original>
